<compile_context>
chip_gen: v5e
topology: v5e:2x2
jax: 0.10.0
libtpu: 0.0.40
codegen_flags: <defaults>
</compile_context>

<pallas_src>
import functools

import jax
import jax.numpy as jnp
from jax.experimental import pallas as pl
from jax.experimental.pallas import tpu as pltpu

FILTER_SIZES = (2, 3, 4)          # must stay sorted ascending (suffix-column trick)
assert FILTER_SIZES == tuple(sorted(FILTER_SIZES))
MAX_FS = max(FILTER_SIZES)
LANE = 128


def _round_up(n, m):
    return ((n + m - 1) // m) * m


def _choose_batch_tile(B, batch_tile):
    if B <= batch_tile:
        # Split into two sublane-aligned tiles when possible so the "parallel"
        # grid axis has >= 2 steps (keeps both v7x TensorCores busy).
        half = B // 2
        if B % 2 == 0 and half % 8 == 0:
            return half
        return B
    # keep the output tile sublane-aligned (multiple of 8)
    return max(8, (batch_tile // 8) * 8)


def _vmem_limit_bytes():
    # ~3/4 of physical VMEM: ~48 MiB on v7x (64 MiB), ~96 MiB on v5e/v6e (128 MiB).
    try:
        cap = getattr(pltpu.get_tpu_info(), "vmem_capacity_bytes", None)
        if cap:
            return min((int(cap) * 3) // 4, 100 * 1024 * 1024)
    except Exception:
        pass
    return 48 * 1024 * 1024


# ----------------------------------------------------------------------------
# Kernel
# ----------------------------------------------------------------------------
def _bcnn_kernel(x_ref, wcat_ref, bcat_ref, fcw_ref, fcb_ref, out_ref, *, use_slab):
    # x_ref:    [TB, S + MAX_FS - 1, E]  batch tile, sequence pre-padded with zeros
    # wcat_ref: [MAX_FS*E, 3*Fp]         fused conv weights (zero padded per branch)
    # bcat_ref: [1, 3*Fp]                fused conv bias (f32)
    # fcw_ref:  [3*Fp, Op]               FC weight (f32, zero padded)
    # fcb_ref:  [1, Op]                  FC bias (f32)
    # out_ref:  [TB, Op]
    x = x_ref[...]
    TB, Sp, E = x.shape
    S = Sp - (MAX_FS - 1)
    KF = wcat_ref.shape[1]                       # 3 * Fp
    Fp = KF // len(FILTER_SIZES)
    M = TB * S

    if use_slab:
        # Fused im2col slab: window p = [x[p], x[p+1], x[p+2], x[p+3]] on lanes.
        # Best when E is small (K = 4E still fills the MXU depth).
        slab = jnp.concatenate([x[:, k:k + S, :] for k in range(MAX_FS)], axis=-1)
        slab = slab.reshape(M, MAX_FS * E)
        conv = jnp.dot(slab, wcat_ref[...], preferred_element_type=jnp.float32)
    else:
        # Shift-and-accumulate over k: one matmul per shift, restricted to the
        # nonzero (suffix) weight-column block (branches with fs > k). Avoids
        # replicating x 4x in VMEM and skips the zero-padded-K MXU FLOPs.
        parts = {}                                # col0 -> accumulated [M, KF-col0]
        for k in range(MAX_FS):
            nb = sum(1 for fs in FILTER_SIZES if fs > k)
            col0 = KF - nb * Fp
            xk = x[:, k:k + S, :].reshape(M, E)
            p = jnp.dot(xk, wcat_ref[k * E:(k + 1) * E, col0:],
                        preferred_element_type=jnp.float32)
            parts[col0] = p if col0 not in parts else parts[col0] + p
        cols = sorted(parts)                      # ascending col0; cols[0] == 0
        conv = parts[cols[0]]
        for c in cols[1:]:                        # merge narrower suffixes (lane-aligned)
            conv = jnp.concatenate([conv[:, :c], conv[:, c:] + parts[c]], axis=-1)

    conv = jnp.maximum(conv + bcat_ref[...], 0.0)     # bias + ReLU (f32)
    conv = conv.reshape(TB, S, KF)

    # Max-pool each branch over its VALID window positions only (p <= S - fs):
    # exact match to PyTorch max_pool1d over L = S - fs + 1, no masks/iotas.
    pooled = jnp.concatenate(
        [jnp.max(conv[:, :S - fs + 1, i * Fp:(i + 1) * Fp], axis=1)
         for i, fs in enumerate(FILTER_SIZES)], axis=-1)       # [TB, 3*Fp] f32

    # TODO(synk): dropout omitted (inference semantics — identity).
    out = jnp.dot(pooled, fcw_ref[...], preferred_element_type=jnp.float32)
    out_ref[...] = (out + fcb_ref[...]).astype(out_ref.dtype)


# ----------------------------------------------------------------------------
# Wrapper
# ----------------------------------------------------------------------------
def bcnn_forward(x, packed, *, out_dim, batch_tile=64,
                 compute_dtype=jnp.bfloat16, conv_mode="auto"):
    """x: [B, S, E] embedded text. packed: dict from pack_params(). -> [B, out_dim]."""
    B, S, E = x.shape
    if S < MAX_FS:
        raise ValueError(f"sequence length {S} must be >= max filter size {MAX_FS}")

    wcat = packed["wcat"].astype(compute_dtype)   # conv weights in compute dtype
    bcat = packed["bcat"].astype(jnp.float32)
    fcw = packed["fcw"].astype(jnp.float32)       # FC kept in f32 (tiny, tighter match)
    fcb = packed["fcb"].astype(jnp.float32)
    Op = fcw.shape[1]

    tb = _choose_batch_tile(B, batch_tile)
    Bp = _round_up(B, tb)

    # Hoisted layout work: cast once, zero-pad the sequence tail (im2col) and
    # the batch up to a tile multiple — no per-step zeros/concat in the kernel.
    xp = jnp.pad(x.astype(compute_dtype), ((0, Bp - B), (0, MAX_FS - 1), (0, 0)))
    Sp = S + MAX_FS - 1

    if conv_mode == "auto":
        use_slab = E < 128       # tiny K: fused K=4E im2col fills MXU depth better
    else:
        use_slab = (conv_mode == "slab")

    kernel = functools.partial(_bcnn_kernel, use_slab=use_slab)

    # NOTE: wcat/bcat/fcw/fcb are grid-invariant; single-buffering them
    # (pipeline_mode=pl.Buffered(1)) would halve their VMEM footprint at BERT
    # scale — omitted here to stay on the most portable pallas_call path.
    def _const_spec(shape):
        return pl.BlockSpec(shape, lambda i: (0, 0))

    out = pl.pallas_call(
        kernel,
        out_shape=jax.ShapeDtypeStruct((Bp, Op), jnp.float32),
        grid_spec=pltpu.PrefetchScalarGridSpec(
            num_scalar_prefetch=0,
            grid=(Bp // tb,),
            in_specs=[
                pl.BlockSpec((tb, Sp, E), lambda i: (i, 0, 0)),
                _const_spec(wcat.shape),
                _const_spec(bcat.shape),
                _const_spec(fcw.shape),
                _const_spec(fcb.shape),
            ],
            out_specs=pl.BlockSpec((tb, Op), lambda i: (i, 0)),
        ),
        compiler_params=pltpu.CompilerParams(
            dimension_semantics=("parallel",),
            vmem_limit_bytes=_vmem_limit_bytes(),
        ),
    )(xp, wcat, bcat, fcw, fcb)
    return out[:B, :out_dim]


# ----------------------------------------------------------------------------
# Parameter construction (PyTorch-default-style init + lane-dense packing)
# ----------------------------------------------------------------------------
def init_raw_params(key, embedding_dim, n_filters, filter_sizes, output_dim):
    keys = jax.random.split(key, 2 * len(filter_sizes) + 2)
    raw = {}
    for i, fs in enumerate(filter_sizes):
        bound = 1.0 / (fs * embedding_dim) ** 0.5
        raw[f"w{fs}"] = jax.random.uniform(
            keys[2 * i], (n_filters, fs, embedding_dim), jnp.float32,
            -bound, bound)                                  # Conv2d weight [F, fs, E]
        raw[f"b{fs}"] = jax.random.uniform(
            keys[2 * i + 1], (n_filters,), jnp.float32, -bound, bound)
    fc_in = len(filter_sizes) * n_filters
    bound = 1.0 / fc_in ** 0.5
    raw["fcw"] = jax.random.uniform(keys[-2], (output_dim, fc_in),
                                    jnp.float32, -bound, bound)
    raw["fcb"] = jax.random.uniform(keys[-1], (output_dim,),
                                    jnp.float32, -bound, bound)
    return raw


def pack_params(raw, embedding_dim, n_filters, filter_sizes, output_dim,
                lane=LANE):
    E = embedding_dim
    max_fs = max(filter_sizes)
    Fp = _round_up(n_filters, lane)
    Op = _round_up(output_dim, lane)

    w_blocks, b_blocks, fc_blocks = [], [], []
    fcw_t = raw["fcw"].T                                     # [3F, out_dim]
    for i, fs in enumerate(filter_sizes):
        w = raw[f"w{fs}"].reshape(n_filters, fs * E).T       # [fs*E, F]
        w_blocks.append(
            jnp.pad(w, ((0, (max_fs - fs) * E), (0, Fp - n_filters))))
        b_blocks.append(jnp.pad(raw[f"b{fs}"], (0, Fp - n_filters)))
        fcw_i = fcw_t[i * n_filters:(i + 1) * n_filters, :]  # [F, out_dim]
        fc_blocks.append(
            jnp.pad(fcw_i, ((0, Fp - n_filters), (0, Op - output_dim))))

    return {
        "wcat": jnp.concatenate(w_blocks, axis=1),           # [max_fs*E, 3*Fp]
        "bcat": jnp.concatenate(b_blocks)[None, :],          # [1, 3*Fp]
        "fcw": jnp.concatenate(fc_blocks, axis=0),           # [3*Fp, Op]
        "fcb": jnp.pad(raw["fcb"], (0, Op - output_dim))[None, :],  # [1, Op]
    }


# ----------------------------------------------------------------------------
# Pure-JAX reference (dropout = identity)
# ----------------------------------------------------------------------------
def ref_forward(x, raw, n_filters, filter_sizes):
    B, S, E = x.shape
    pooled = []
    for fs in filter_sizes:
        w = raw[f"w{fs}"].reshape(n_filters, fs * E).T       # [fs*E, F]
        L = S - fs + 1
        windows = jnp.stack(
            [x[:, p:p + fs, :].reshape(B, fs * E) for p in range(L)], axis=1)
        conv = jnp.maximum(
            jnp.einsum("blk,kf->blf", windows, w) + raw[f"b{fs}"], 0.0)
        pooled.append(jnp.max(conv, axis=1))                 # [B, F]
    cat = jnp.concatenate(pooled, axis=1)                    # [B, 3F]
    return cat @ raw["fcw"].T + raw["fcb"]


if __name__ == "__main__":
    E, N_FILTERS, OUT_DIM = 32, 100, 4
    key = jax.random.PRNGKey(0)
    k_x1, k_x2, k_p = jax.random.split(key, 3)

    raw = init_raw_params(k_p, E, N_FILTERS, FILTER_SIZES, OUT_DIM)
    packed = pack_params(raw, E, N_FILTERS, FILTER_SIZES, OUT_DIM)

    # Case 1: small batch, fused-slab conv path; f32 (tight) and bf16 (default).
    B1, S1 = 2, 8
    x1 = jax.random.normal(k_x1, (B1, S1, E), jnp.float32)
    ref1 = ref_forward(x1, raw, N_FILTERS, FILTER_SIZES)

    out_f32 = jax.block_until_ready(
        bcnn_forward(x1, packed, out_dim=OUT_DIM, compute_dtype=jnp.float32))
    assert out_f32.shape == (B1, OUT_DIM), out_f32.shape
    assert jnp.allclose(out_f32, ref1, atol=1e-3, rtol=1e-3), (out_f32, ref1)

    out_bf16 = jax.block_until_ready(
        bcnn_forward(x1, packed, out_dim=OUT_DIM))          # default bf16 compute
    assert jnp.allclose(out_bf16, ref1, atol=5e-2, rtol=5e-2), (out_bf16, ref1)

    # Case 2: multi-step grid (2 batch tiles), S != 8, shift-and-accumulate conv.
    B2, S2 = 32, 12
    x2 = jax.random.normal(k_x2, (B2, S2, E), jnp.float32)
    ref2 = ref_forward(x2, raw, N_FILTERS, FILTER_SIZES)
    out2 = jax.block_until_ready(
        bcnn_forward(x2, packed, out_dim=OUT_DIM,
                     compute_dtype=jnp.float32, conv_mode="shift"))
    assert out2.shape == (B2, OUT_DIM), out2.shape
    assert jnp.allclose(out2, ref2, atol=1e-3, rtol=1e-3), (out2, ref2)

    print("KERNEL_OK")
</pallas_src>

<mosaic_0001>
module attributes {stable_mosaic.version = 11 : i64} {
  func.func @_bcnn_kernel(%arg0: i32, %arg1: memref<2x11x32xf32, #tpu.memory_space<vmem>>, %arg2: memref<128x384xf32, #tpu.memory_space<vmem>>, %arg3: memref<1x384xf32, #tpu.memory_space<vmem>>, %arg4: memref<384x128xf32, #tpu.memory_space<vmem>>, %arg5: memref<1x128xf32, #tpu.memory_space<vmem>>, %arg6: memref<2x128xf32, #tpu.memory_space<vmem>>) attributes {dimension_semantics = [#tpu.dimension_semantics<parallel>], iteration_bounds = array<i64: 1>, scalar_prefetch = 0 : i64, scratch_operands = 0 : i64, tpu.core_type = #tpu.core_type<tc>, window_params = [{transform_indices = @transform_0, window_bounds = array<i64: 2, 11, 32>}, {pipeline_mode = #tpu.pipeline_mode<synchronous>, transform_indices = @transform_1, window_bounds = array<i64: 128, 384>}, {pipeline_mode = #tpu.pipeline_mode<synchronous>, transform_indices = @transform_2, window_bounds = array<i64: 1, 384>}, {pipeline_mode = #tpu.pipeline_mode<synchronous>, transform_indices = @transform_3, window_bounds = array<i64: 384, 128>}, {pipeline_mode = #tpu.pipeline_mode<synchronous>, transform_indices = @transform_4, window_bounds = array<i64: 1, 128>}, {transform_indices = @transform_5, window_bounds = array<i64: 2, 128>}]} {
    %c0 = arith.constant 0 : index
    %c0_0 = arith.constant 0 : index
    %c0_1 = arith.constant 0 : index
    %0 = vector.load %arg1[%c0, %c0_0, %c0_1] : memref<2x11x32xf32, #tpu.memory_space<vmem>>, vector<2x11x32xf32>
    %1 = vector.extract_strided_slice %0 {offsets = [0, 0, 0], sizes = [2, 8, 32], strides = [1, 1, 1]} : vector<2x11x32xf32> to vector<2x8x32xf32>
    %2 = vector.extract_strided_slice %0 {offsets = [0, 1, 0], sizes = [2, 8, 32], strides = [1, 1, 1]} : vector<2x11x32xf32> to vector<2x8x32xf32>
    %3 = vector.extract_strided_slice %0 {offsets = [0, 2, 0], sizes = [2, 8, 32], strides = [1, 1, 1]} : vector<2x11x32xf32> to vector<2x8x32xf32>
    %4 = vector.extract_strided_slice %0 {offsets = [0, 3, 0], sizes = [2, 8, 32], strides = [1, 1, 1]} : vector<2x11x32xf32> to vector<2x8x32xf32>
    %5 = tpu.concatenate %1, %2, %3, %4 in 2 : vector<2x8x32xf32>, vector<2x8x32xf32>, vector<2x8x32xf32>, vector<2x8x32xf32> -> vector<2x8x128xf32>
    %6 = vector.shape_cast %5 : vector<2x8x128xf32> to vector<16x128xf32>
    %c0_2 = arith.constant 0 : index
    %c0_3 = arith.constant 0 : index
    %7 = vector.load %arg2[%c0_2, %c0_3] : memref<128x384xf32, #tpu.memory_space<vmem>>, vector<128x384xf32>
    %cst = arith.constant dense<0.000000e+00> : vector<16x384xf32>
    %8 = tpu.matmul %6, %7, %cst {dimension_numbers = #tpu.dot_dimension_numbers<[1], [0], [0], [1], [0, 0, 1, 1], [], []>} : vector<16x128xf32>, vector<128x384xf32>, vector<16x384xf32> -> vector<16x384xf32>
    %c0_4 = arith.constant 0 : index
    %c0_5 = arith.constant 0 : index
    %9 = vector.load %arg3[%c0_4, %c0_5] : memref<1x384xf32, #tpu.memory_space<vmem>>, vector<1x384xf32>
    %10 = vector.broadcast %9 : vector<1x384xf32> to vector<16x384xf32>
    %11 = arith.addf %8, %10 : vector<16x384xf32>
    %cst_6 = arith.constant 0.000000e+00 : f32
    %12 = vector.broadcast %cst_6 : f32 to vector<16x384xf32>
    %13 = arith.maximumf %11, %12 : vector<16x384xf32>
    %14 = vector.shape_cast %13 : vector<16x384xf32> to vector<2x8x384xf32>
    %15 = vector.extract_strided_slice %14 {offsets = [0, 0, 0], sizes = [2, 7, 128], strides = [1, 1, 1]} : vector<2x8x384xf32> to vector<2x7x128xf32>
    %cst_7 = arith.constant dense<0xFF800000> : vector<2x128xf32>
    %16 = vector.multi_reduction <maximumf>, %15, %cst_7 [1] : vector<2x7x128xf32> to vector<2x128xf32>
    %17 = vector.extract_strided_slice %14 {offsets = [0, 0, 128], sizes = [2, 6, 128], strides = [1, 1, 1]} : vector<2x8x384xf32> to vector<2x6x128xf32>
    %cst_8 = arith.constant dense<0xFF800000> : vector<2x128xf32>
    %18 = vector.multi_reduction <maximumf>, %17, %cst_8 [1] : vector<2x6x128xf32> to vector<2x128xf32>
    %19 = vector.extract_strided_slice %14 {offsets = [0, 0, 256], sizes = [2, 5, 128], strides = [1, 1, 1]} : vector<2x8x384xf32> to vector<2x5x128xf32>
    %cst_9 = arith.constant dense<0xFF800000> : vector<2x128xf32>
    %20 = vector.multi_reduction <maximumf>, %19, %cst_9 [1] : vector<2x5x128xf32> to vector<2x128xf32>
    %21 = tpu.concatenate %16, %18, %20 in 1 : vector<2x128xf32>, vector<2x128xf32>, vector<2x128xf32> -> vector<2x384xf32>
    %c0_10 = arith.constant 0 : index
    %c0_11 = arith.constant 0 : index
    %22 = vector.load %arg4[%c0_10, %c0_11] : memref<384x128xf32, #tpu.memory_space<vmem>>, vector<384x128xf32>
    %cst_12 = arith.constant dense<0.000000e+00> : vector<2x128xf32>
    %23 = tpu.matmul %21, %22, %cst_12 {dimension_numbers = #tpu.dot_dimension_numbers<[1], [0], [0], [1], [0, 0, 1, 1], [], []>} : vector<2x384xf32>, vector<384x128xf32>, vector<2x128xf32> -> vector<2x128xf32>
    %c0_13 = arith.constant 0 : index
    %c0_14 = arith.constant 0 : index
    %24 = vector.load %arg5[%c0_13, %c0_14] : memref<1x128xf32, #tpu.memory_space<vmem>>, vector<1x128xf32>
    %25 = vector.broadcast %24 : vector<1x128xf32> to vector<2x128xf32>
    %26 = arith.addf %23, %25 : vector<2x128xf32>
    %c0_15 = arith.constant 0 : index
    %c0_16 = arith.constant 0 : index
    %27 = vector.load %arg6[%c0_15, %c0_16] : memref<2x128xf32, #tpu.memory_space<vmem>>, vector<2x128xf32>
    tpu.vector_store %arg6[%c0_15, %c0_16], %26 {strides = array<i32>} : memref<2x128xf32, #tpu.memory_space<vmem>>, vector<2x128xf32>,
    return
  }
  func.func @transform_0(%arg0: i32) -> (i32, i32, i32) {
    %c0_i32 = arith.constant 0 : i32
    %c0_i32_0 = arith.constant 0 : i32
    %c0_i32_1 = arith.constant 0 : i32
    return %arg0, %c0_i32, %c0_i32_0 : i32, i32, i32
  }
  func.func @transform_1(%arg0: i32) -> (i32, i32) {
    %c0_i32 = arith.constant 0 : i32
    %c0_i32_0 = arith.constant 0 : i32
    %c0_i32_1 = arith.constant 0 : i32
    return %c0_i32, %c0_i32_0 : i32, i32
  }
  func.func @transform_2(%arg0: i32) -> (i32, i32) {
    %c0_i32 = arith.constant 0 : i32
    %c0_i32_0 = arith.constant 0 : i32
    %c0_i32_1 = arith.constant 0 : i32
    return %c0_i32, %c0_i32_0 : i32, i32
  }
  func.func @transform_3(%arg0: i32) -> (i32, i32) {
    %c0_i32 = arith.constant 0 : i32
    %c0_i32_0 = arith.constant 0 : i32
    %c0_i32_1 = arith.constant 0 : i32
    return %c0_i32, %c0_i32_0 : i32, i32
  }
  func.func @transform_4(%arg0: i32) -> (i32, i32) {
    %c0_i32 = arith.constant 0 : i32
    %c0_i32_0 = arith.constant 0 : i32
    %c0_i32_1 = arith.constant 0 : i32
    return %c0_i32, %c0_i32_0 : i32, i32
  }
  func.func @transform_5(%arg0: i32) -> (i32, i32) {
    %c0_i32 = arith.constant 0 : i32
    %c0_i32_0 = arith.constant 0 : i32
    return %arg0, %c0_i32 : i32, i32
  }
}

</mosaic_0001>

<llo_original>
// kernel: tpu_custom_call.1
$region0: #{tpu_custom_call.1}
  #allocation0 [shape = 'u32[]', space=smem, size = 0x4, offset = 0x4, fixed_abs, tag = 'smem constant byte address 0x4 - core index']
  #allocation1 [shape = 'u32[72,128]{1,0:T(1,128)}', space=vmem, size = 0x9000, scoped, tag = 'internal scratch']
  %s0 = inlined_call_operand.vmem [shape: f32[2,11,32], index: 0, kind: input, shape index: {}]
  %s1 = inlined_call_operand.hbm [shape: f32[128,384], index: 1, kind: input, shape index: {}]
  %s2 = inlined_call_operand.vmem [shape: f32[1,384], index: 2, kind: input, shape index: {}]
  %s3 = inlined_call_operand.hbm [shape: f32[384,128], index: 3, kind: input, shape index: {}]
  %s4 = inlined_call_operand.vmem [shape: f32[1,128], index: 4, kind: input, shape index: {}]
  %s5 = inlined_call_operand.hbm [shape: f32[2,128], index: 5, kind: output, shape index: {}]
  %s6 = sld [smem:[#allocation0]]
  $region38: #{tpu_custom_call.1} parent=0
    _
  %s8 = ssub.s32 1, %s6
  %s9 = scalar_select 0, %s8, %s6
  $region1: #{tpu_custom_call.1} parent=0
    #allocation2 [shape = 'u8[196608]{0}', space=vmem, size = 0x30000, scoped, tag = 'input window, operand 1, single buffered']
    #allocation3 [shape = 's32[1]{0}', space=sflag, size = 0x4, scoped, tag = 'scoped memory for tpu_custom_call.1']
    #allocation4 [shape = 's32[1]{0}', space=sflag, size = 0x4, scoped, tag = 'scoped memory for tpu_custom_call.1']
    #allocation5 [shape = 'u8[196608]{0}', space=vmem, size = 0x30000, scoped, tag = 'input window, operand 3, single buffered']
    #allocation6 [shape = 's32[1]{0}', space=sflag, size = 0x4, scoped, tag = 'scoped memory for tpu_custom_call.1']
    #allocation7 [shape = 'u8[1024]{0}', space=vmem, size = 0x400, scoped, tag = 'output window, operand 0, single buffered']
    %10 = vsyncpa [#allocation3], 0
    %11 = vsyncpa [#allocation6], 0
    %12 = vsyncpa [#allocation4], 0
    // Predicated region
    $region2: #{tpu_custom_call.1} parent=1 // pred_check
      _
    $region3: #{tpu_custom_call.1} parent=1 // pred_check_branch
      %14 = sbr.rel (0) target = $region5
    $region4: #{tpu_custom_call.1} parent=1 // pred_region
      _
    $region5: #{tpu_custom_call.1} parent=1 // pred_fallthru
      _
    // Predicated region
    $region6: #{tpu_custom_call.1} parent=1 // pred_check
      _
    $region7: #{tpu_custom_call.1} parent=1 // pred_check_branch
      %16 = sbr.rel (0) target = $region9
    $region8: #{tpu_custom_call.1} parent=1 // pred_region
      %18 = vsyncadd [#allocation3], 0
      %s19 = sshll.u32 %s1, 4
      %s20 = int_to_ptr.hbm [resolvable:$true] %s19
      %s21 = sshll.u32 [#allocation2], 4
      %s22 = int_to_ptr.vmem [resolvable:$true] %s21
      %27 = dma.hbm_to_vmem [thread:$0]  %s20, 6144, %s22, [#allocation3], 384, 384, 24
    $region9: #{tpu_custom_call.1} parent=1 // pred_fallthru
      _
    // Predicated region
    $region10: #{tpu_custom_call.1} parent=1 // pred_check
      _
    $region11: #{tpu_custom_call.1} parent=1 // pred_check_branch
      %29 = sbr.rel (0) target = $region13
    $region12: #{tpu_custom_call.1} parent=1 // pred_region
      _
    $region13: #{tpu_custom_call.1} parent=1 // pred_fallthru
      _
    // Predicated region
    $region14: #{tpu_custom_call.1} parent=1 // pred_check
      _
    $region15: #{tpu_custom_call.1} parent=1 // pred_check_branch
      %31 = sbr.rel (0) target = $region17
    $region16: #{tpu_custom_call.1} parent=1 // pred_region
      %33 = vsyncadd [#allocation6], 0
      %s34 = sshll.u32 %s3, 4
      %s35 = int_to_ptr.hbm [resolvable:$true] %s34
      %s36 = sshll.u32 [#allocation5], 4
      %s37 = int_to_ptr.vmem [resolvable:$true] %s36
      %42 = dma.hbm_to_vmem [thread:$0]  %s35, 6144, %s37, [#allocation6], 128, 128, 8
    $region17: #{tpu_custom_call.1} parent=1 // pred_fallthru
      _
    // Predicated region
    $region18: #{tpu_custom_call.1} parent=1 // pred_check
      _
    $region19: #{tpu_custom_call.1} parent=1 // pred_check_branch
      %44 = sbr.rel (0) target = $region21
    $region20: #{tpu_custom_call.1} parent=1 // pred_region
      _
    $region21: #{tpu_custom_call.1} parent=1 // pred_fallthru
      _
    // Predicated region
    $region22: #{tpu_custom_call.1} parent=1 // pred_check
      _
    $region23: #{tpu_custom_call.1} parent=1 // pred_check_branch
      %46 = sbr.rel (0) target = $region25
    $region24: #{tpu_custom_call.1} parent=1 // pred_region
      %48 = dma.done [#allocation3], 6144
    $region25: #{tpu_custom_call.1} parent=1 // pred_fallthru
      _
    // Predicated region
    $region26: #{tpu_custom_call.1} parent=1 // pred_check
      _
    $region27: #{tpu_custom_call.1} parent=1 // pred_check_branch
      %50 = sbr.rel (0) target = $region29
    $region28: #{tpu_custom_call.1} parent=1 // pred_region
      %52 = dma.done [#allocation6], 6144
    $region29: #{tpu_custom_call.1} parent=1 // pred_fallthru
      _
    %v53 = vld [vmem:[%s0] sm:$0xff]
    %v54 = vld [vmem:[%s0 + $0x8] sm:$0x7]
    %v55 = vld [vmem:[%s0 + $0x10] sm:$0xff]
    %v56 = vld [vmem:[%s0 + $0x18] sm:$0x7]
    %vm61 = vcmask 1046528
    %v62 = vrot.slane %v53, 1
    %v63 = vrot.slane %v54, 1
    %v64 = vsel %vm61, %v62, %v63
    %v65 = vrot.slane %v55, 1
    %v66 = vrot.slane %v56, 1
    %v67 = vsel %vm61, %v65, %v66
    %68 = vrot.lane.b32.xlu0 %v64, 32
    %v69 = vpop.permute.xlu0 %68
    %70 = vrot.lane.b32.xlu0 %v67, 32
    %v71 = vpop.permute.xlu0 %70
    %vm74 = vcmask 1045504
    %v75 = vrot.slane %v53, 2
    %v76 = vrot.slane %v54, 2
    %v77 = vsel %vm74, %v75, %v76
    %v78 = vrot.slane %v55, 2
    %v79 = vrot.slane %v56, 2
    %v80 = vsel %vm74, %v78, %v79
    %81 = vrot.lane.b32.xlu0 %v77, 64
    %v82 = vpop.permute.xlu0 %81
    %83 = vrot.lane.b32.xlu0 %v80, 64
    %v84 = vpop.permute.xlu0 %83
    %vm87 = vcmask 1044480
    %v88 = vrot.slane %v53, 3
    %v89 = vrot.slane %v54, 3
    %v90 = vsel %vm87, %v88, %v89
    %v91 = vrot.slane %v55, 3
    %v92 = vrot.slane %v56, 3
    %v93 = vsel %vm87, %v91, %v92
    %94 = vrot.lane.b32.xlu0 %v90, 96
    %v95 = vpop.permute.xlu0 %94
    %96 = vrot.lane.b32.xlu0 %v93, 96
    %v97 = vpop.permute.xlu0 %96
    %vm100 = vcmask 261120
    %v101 = vsel %vm100, %v53, %v69
    %v102 = vsel %vm100, %v55, %v71
    %vm103 = vcmask 523264
    %v104 = vsel %vm103, %v101, %v82
    %v105 = vsel %vm103, %v102, %v84
    %vm106 = vcmask 785408
    %v107 = vsel %vm106, %v104, %v95
    %v108 = vsel %vm106, %v105, %v97
    %v109 = vld [vmem:[#allocation2] sm:$0xff]
    %v110 = vld [vmem:[#allocation2 + $0x8] sm:$0xff]
    %v111 = vld [vmem:[#allocation2 + $0x10] sm:$0xff]
    %v112 = vld [vmem:[#allocation2 + $0x18] sm:$0xff]
    %v113 = vld [vmem:[#allocation2 + $0x20] sm:$0xff]
    %v114 = vld [vmem:[#allocation2 + $0x28] sm:$0xff]
    %v115 = vld [vmem:[#allocation2 + $0x30] sm:$0xff]
    %v116 = vld [vmem:[#allocation2 + $0x38] sm:$0xff]
    %v117 = vld [vmem:[#allocation2 + $0x40] sm:$0xff]
    %v118 = vld [vmem:[#allocation2 + $0x48] sm:$0xff]
    %v119 = vld [vmem:[#allocation2 + $0x50] sm:$0xff]
    %v120 = vld [vmem:[#allocation2 + $0x58] sm:$0xff]
    %v121 = vld [vmem:[#allocation2 + $0x60] sm:$0xff]
    %v122 = vld [vmem:[#allocation2 + $0x68] sm:$0xff]
    %v123 = vld [vmem:[#allocation2 + $0x70] sm:$0xff]
    %v124 = vld [vmem:[#allocation2 + $0x78] sm:$0xff]
    %v125 = vld [vmem:[#allocation2 + $0x80] sm:$0xff]
    %v126 = vld [vmem:[#allocation2 + $0x88] sm:$0xff]
    %v127 = vld [vmem:[#allocation2 + $0x90] sm:$0xff]
    %v128 = vld [vmem:[#allocation2 + $0x98] sm:$0xff]
    %v129 = vld [vmem:[#allocation2 + $0xa0] sm:$0xff]
    %v130 = vld [vmem:[#allocation2 + $0xa8] sm:$0xff]
    %v131 = vld [vmem:[#allocation2 + $0xb0] sm:$0xff]
    %v132 = vld [vmem:[#allocation2 + $0xb8] sm:$0xff]
    %v133 = vld [vmem:[#allocation2 + $0xc0] sm:$0xff]
    %v134 = vld [vmem:[#allocation2 + $0xc8] sm:$0xff]
    %v135 = vld [vmem:[#allocation2 + $0xd0] sm:$0xff]
    %v136 = vld [vmem:[#allocation2 + $0xd8] sm:$0xff]
    %v137 = vld [vmem:[#allocation2 + $0xe0] sm:$0xff]
    %v138 = vld [vmem:[#allocation2 + $0xe8] sm:$0xff]
    %v139 = vld [vmem:[#allocation2 + $0xf0] sm:$0xff]
    %v140 = vld [vmem:[#allocation2 + $0xf8] sm:$0xff]
    %v141 = vld [vmem:[#allocation2 + $0x100] sm:$0xff]
    %v142 = vld [vmem:[#allocation2 + $0x108] sm:$0xff]
    %v143 = vld [vmem:[#allocation2 + $0x110] sm:$0xff]
    %v144 = vld [vmem:[#allocation2 + $0x118] sm:$0xff]
    %v145 = vld [vmem:[#allocation2 + $0x120] sm:$0xff]
    %v146 = vld [vmem:[#allocation2 + $0x128] sm:$0xff]
    %v147 = vld [vmem:[#allocation2 + $0x130] sm:$0xff]
    %v148 = vld [vmem:[#allocation2 + $0x138] sm:$0xff]
    %v149 = vld [vmem:[#allocation2 + $0x140] sm:$0xff]
    %v150 = vld [vmem:[#allocation2 + $0x148] sm:$0xff]
    %v151 = vld [vmem:[#allocation2 + $0x150] sm:$0xff]
    %v152 = vld [vmem:[#allocation2 + $0x158] sm:$0xff]
    %v153 = vld [vmem:[#allocation2 + $0x160] sm:$0xff]
    %v154 = vld [vmem:[#allocation2 + $0x168] sm:$0xff]
    %v155 = vld [vmem:[#allocation2 + $0x170] sm:$0xff]
    %v156 = vld [vmem:[#allocation2 + $0x178] sm:$0xff]
    %v157 = vld [vmem:[%s2] sm:$0x7]
    %v159 = vperm.slane %v157, 0
    %v160 = vperm.slane %v157, 1
    %v161 = vperm.slane %v157, 2
    %165 = vmatpush.msra.mxu0 %v154
    %166 = vmatpush.msra.mxu0 %v151
    %167 = vmatpush.msra.mxu0 %v148
    %168 = vmatpush.msra.mxu0 %v145
    %169 = vmatpush.msra.mxu0 %v142
    %170 = vmatpush.msra.mxu0 %v139
    %171 = vmatpush.msra.mxu0 %v136
    %172 = vmatpush.msra.mxu0 %v133
    %173 = vmatpush.msra.mxu0 %v130
    %174 = vmatpush.msra.mxu0 %v127
    %175 = vmatpush.msra.mxu0 %v124
    %176 = vmatpush.msra.mxu0 %v121
    %177 = vmatpush.msra.mxu0 %v118
    %178 = vmatpush.msra.mxu0 %v115
    %179 = vmatpush.msra.mxu0 %v112
    %180 = vmatpush.msra.mxu0 %v109
    %181 = vmatmul.f32.gmra.mxu0 %v107
    %v182 = vpop.f32.mrf.mxu0
    %v183 = vadd.f32 %v159, %v182
    %184 = vmatmul.f32.gmra.mxu0 %v108
    %v185 = vpop.f32.mrf.mxu0
    %v186 = vadd.f32 %v159, %v185
    %187 = vdwg.mxu0
    %188 = vmatpush.msra.mxu0 %v155
    %189 = vmatpush.msra.mxu0 %v152
    %190 = vmatpush.msra.mxu0 %v149
    %191 = vmatpush.msra.mxu0 %v146
    %192 = vmatpush.msra.mxu0 %v143
    %193 = vmatpush.msra.mxu0 %v140
    %194 = vmatpush.msra.mxu0 %v137
    %195 = vmatpush.msra.mxu0 %v134
    %196 = vmatpush.msra.mxu0 %v131
    %197 = vmatpush.msra.mxu0 %v128
    %198 = vmatpush.msra.mxu0 %v125
    %199 = vmatpush.msra.mxu0 %v122
    %200 = vmatpush.msra.mxu0 %v119
    %201 = vmatpush.msra.mxu0 %v116
    %202 = vmatpush.msra.mxu0 %v113
    %203 = vmatpush.msra.mxu0 %v110
    %204 = vmatmul.f32.gmra.mxu0 %v107
    %v205 = vpop.f32.mrf.mxu0
    %v206 = vadd.f32 %v160, %v205
    %207 = vmatmul.f32.gmra.mxu0 %v108
    %v208 = vpop.f32.mrf.mxu0
    %v209 = vadd.f32 %v160, %v208
    %210 = vdwg.mxu0
    %211 = vmatpush.msra.mxu0 %v156
    %212 = vmatpush.msra.mxu0 %v153
    %213 = vmatpush.msra.mxu0 %v150
    %214 = vmatpush.msra.mxu0 %v147
    %215 = vmatpush.msra.mxu0 %v144
    %216 = vmatpush.msra.mxu0 %v141
    %217 = vmatpush.msra.mxu0 %v138
    %218 = vmatpush.msra.mxu0 %v135
    %219 = vmatpush.msra.mxu0 %v132
    %220 = vmatpush.msra.mxu0 %v129
    %221 = vmatpush.msra.mxu0 %v126
    %222 = vmatpush.msra.mxu0 %v123
    %223 = vmatpush.msra.mxu0 %v120
    %224 = vmatpush.msra.mxu0 %v117
    %225 = vmatpush.msra.mxu0 %v114
    %226 = vmatpush.msra.mxu0 %v111
    %227 = vmatmul.f32.gmra.mxu0 %v107
    %v228 = vpop.f32.mrf.mxu0
    %v229 = vadd.f32 %v161, %v228
    %230 = vmatmul.f32.gmra.mxu0 %v108
    %v231 = vpop.f32.mrf.mxu0
    %v232 = vadd.f32 %v161, %v231
    %233 = vdwg.mxu0
    %v234 = vmax.f32 %v183, 0.0
    %v235 = vmax.f32 %v206, 0.0
    %v236 = vmax.f32 %v229, 0.0
    %v237 = vmax.f32 %v186, 0.0
    %v238 = vmax.f32 %v209, 0.0
    %v239 = vmax.f32 %v232, 0.0
    %v240 = vsel %vm61, %v234, -inf
    %v241 = vrot.slane %v240, 4
    %v242 = vmax.f32 %v240, %v241
    %v243 = vrot.slane %v242, 2
    %v244 = vmax.f32 %v242, %v243
    %v245 = vrot.slane %v244, 1
    %v246 = vmax.f32 %v244, %v245
    %v247 = vsel %vm61, %v237, -inf
    %v248 = vrot.slane %v247, 4
    %v249 = vmax.f32 %v247, %v248
    %v250 = vrot.slane %v249, 2
    %v251 = vmax.f32 %v249, %v250
    %v252 = vrot.slane %v251, 1
    %v253 = vmax.f32 %v251, %v252
    %v254 = vsel %vm74, %v235, -inf
    %v255 = vrot.slane %v254, 4
    %v256 = vmax.f32 %v254, %v255
    %v257 = vrot.slane %v256, 2
    %v258 = vmax.f32 %v256, %v257
    %v259 = vrot.slane %v258, 1
    %v260 = vmax.f32 %v258, %v259
    %v261 = vsel %vm74, %v238, -inf
    %v262 = vrot.slane %v261, 4
    %v263 = vmax.f32 %v261, %v262
    %v264 = vrot.slane %v263, 2
    %v265 = vmax.f32 %v263, %v264
    %v266 = vrot.slane %v265, 1
    %v267 = vmax.f32 %v265, %v266
    %v268 = vsel %vm87, %v236, -inf
    %v269 = vrot.slane %v268, 4
    %v270 = vmax.f32 %v268, %v269
    %v271 = vrot.slane %v270, 2
    %v272 = vmax.f32 %v270, %v271
    %v273 = vrot.slane %v272, 1
    %v274 = vmax.f32 %v272, %v273
    %v275 = vsel %vm87, %v239, -inf
    %v276 = vrot.slane %v275, 4
    %v277 = vmax.f32 %v275, %v276
    %v278 = vrot.slane %v277, 2
    %v279 = vmax.f32 %v277, %v278
    %v280 = vrot.slane %v279, 1
    %v281 = vmax.f32 %v279, %v280
    %vm284 = vcmask 1041409
    %v285 = vsel %vm284, %v253, %v246
    %v289 = vsel %vm284, %v267, %v260
    %v293 = vsel %vm284, %v281, %v274
    %v295 = vld [vmem:[#allocation5] sm:$0xff]
    %v296 = vld [vmem:[#allocation5 + $0x8] sm:$0xff]
    %v297 = vld [vmem:[#allocation5 + $0x10] sm:$0xff]
    %v298 = vld [vmem:[#allocation5 + $0x18] sm:$0xff]
    %v299 = vld [vmem:[#allocation5 + $0x20] sm:$0xff]
    %v300 = vld [vmem:[#allocation5 + $0x28] sm:$0xff]
    %v301 = vld [vmem:[#allocation5 + $0x30] sm:$0xff]
    %v302 = vld [vmem:[#allocation5 + $0x38] sm:$0xff]
    %v303 = vld [vmem:[#allocation5 + $0x40] sm:$0xff]
    %v304 = vld [vmem:[#allocation5 + $0x48] sm:$0xff]
    %v305 = vld [vmem:[#allocation5 + $0x50] sm:$0xff]
    %v306 = vld [vmem:[#allocation5 + $0x58] sm:$0xff]
    %v307 = vld [vmem:[#allocation5 + $0x60] sm:$0xff]
    %v308 = vld [vmem:[#allocation5 + $0x68] sm:$0xff]
    %v309 = vld [vmem:[#allocation5 + $0x70] sm:$0xff]
    %v310 = vld [vmem:[#allocation5 + $0x78] sm:$0xff]
    %v311 = vld [vmem:[#allocation5 + $0x80] sm:$0xff]
    %v312 = vld [vmem:[#allocation5 + $0x88] sm:$0xff]
    %v313 = vld [vmem:[#allocation5 + $0x90] sm:$0xff]
    %v314 = vld [vmem:[#allocation5 + $0x98] sm:$0xff]
    %v315 = vld [vmem:[#allocation5 + $0xa0] sm:$0xff]
    %v316 = vld [vmem:[#allocation5 + $0xa8] sm:$0xff]
    %v317 = vld [vmem:[#allocation5 + $0xb0] sm:$0xff]
    %v318 = vld [vmem:[#allocation5 + $0xb8] sm:$0xff]
    %v319 = vld [vmem:[#allocation5 + $0xc0] sm:$0xff]
    %v320 = vld [vmem:[#allocation5 + $0xc8] sm:$0xff]
    %v321 = vld [vmem:[#allocation5 + $0xd0] sm:$0xff]
    %v322 = vld [vmem:[#allocation5 + $0xd8] sm:$0xff]
    %v323 = vld [vmem:[#allocation5 + $0xe0] sm:$0xff]
    %v324 = vld [vmem:[#allocation5 + $0xe8] sm:$0xff]
    %v325 = vld [vmem:[#allocation5 + $0xf0] sm:$0xff]
    %v326 = vld [vmem:[#allocation5 + $0xf8] sm:$0xff]
    %v327 = vld [vmem:[#allocation5 + $0x100] sm:$0xff]
    %v328 = vld [vmem:[#allocation5 + $0x108] sm:$0xff]
    %v329 = vld [vmem:[#allocation5 + $0x110] sm:$0xff]
    %v330 = vld [vmem:[#allocation5 + $0x118] sm:$0xff]
    %v331 = vld [vmem:[#allocation5 + $0x120] sm:$0xff]
    %v332 = vld [vmem:[#allocation5 + $0x128] sm:$0xff]
    %v333 = vld [vmem:[#allocation5 + $0x130] sm:$0xff]
    %v334 = vld [vmem:[#allocation5 + $0x138] sm:$0xff]
    %v335 = vld [vmem:[#allocation5 + $0x140] sm:$0xff]
    %v336 = vld [vmem:[#allocation5 + $0x148] sm:$0xff]
    %v337 = vld [vmem:[#allocation5 + $0x150] sm:$0xff]
    %v338 = vld [vmem:[#allocation5 + $0x158] sm:$0xff]
    %v339 = vld [vmem:[#allocation5 + $0x160] sm:$0xff]
    %v340 = vld [vmem:[#allocation5 + $0x168] sm:$0xff]
    %v341 = vld [vmem:[#allocation5 + $0x170] sm:$0xff]
    %v342 = vld [vmem:[#allocation5 + $0x178] sm:$0xff]
    %v343 = vld [vmem:[%s4] sm:$0x1]
    %v345 = vperm.slane %v343, 0
    %347 = vmatpush.msra.mxu0 %v310
    %348 = vmatpush.msra.mxu0 %v309
    %349 = vmatpush.msra.mxu0 %v308
    %350 = vmatpush.msra.mxu0 %v307
    %351 = vmatpush.msra.mxu0 %v306
    %352 = vmatpush.msra.mxu0 %v305
    %353 = vmatpush.msra.mxu0 %v304
    %354 = vmatpush.msra.mxu0 %v303
    %355 = vmatpush.msra.mxu0 %v302
    %356 = vmatpush.msra.mxu0 %v301
    %357 = vmatpush.msra.mxu0 %v300
    %358 = vmatpush.msra.mxu0 %v299
    %359 = vmatpush.msra.mxu0 %v298
    %360 = vmatpush.msra.mxu0 %v297
    %361 = vmatpush.msra.mxu0 %v296
    %362 = vmatpush.msra.mxu0 %v295
    %363 = vmatmul.f32.gmra.mxu0 %v285
    %v364 = vpop.f32.mrf.mxu0
    %v365 = vadd.f32 %v345, %v364
    %366 = vdwg.mxu0
    %367 = vmatpush.msra.mxu0 %v326
    %368 = vmatpush.msra.mxu0 %v325
    %369 = vmatpush.msra.mxu0 %v324
    %370 = vmatpush.msra.mxu0 %v323
    %371 = vmatpush.msra.mxu0 %v322
    %372 = vmatpush.msra.mxu0 %v321
    %373 = vmatpush.msra.mxu0 %v320
    %374 = vmatpush.msra.mxu0 %v319
    %375 = vmatpush.msra.mxu0 %v318
    %376 = vmatpush.msra.mxu0 %v317
    %377 = vmatpush.msra.mxu0 %v316
    %378 = vmatpush.msra.mxu0 %v315
    %379 = vmatpush.msra.mxu0 %v314
    %380 = vmatpush.msra.mxu0 %v313
    %381 = vmatpush.msra.mxu0 %v312
    %382 = vmatpush.msra.mxu0 %v311
    %383 = vmatmul.f32.gmra.mxu0 %v289
    %v384 = vpop.f32.mrf.mxu0
    %v385 = vadd.f32 %v365, %v384
    %386 = vdwg.mxu0
    %387 = vmatpush.msra.mxu0 %v342
    %388 = vmatpush.msra.mxu0 %v341
    %389 = vmatpush.msra.mxu0 %v340
    %390 = vmatpush.msra.mxu0 %v339
    %391 = vmatpush.msra.mxu0 %v338
    %392 = vmatpush.msra.mxu0 %v337
    %393 = vmatpush.msra.mxu0 %v336
    %394 = vmatpush.msra.mxu0 %v335
    %395 = vmatpush.msra.mxu0 %v334
    %396 = vmatpush.msra.mxu0 %v333
    %397 = vmatpush.msra.mxu0 %v332
    %398 = vmatpush.msra.mxu0 %v331
    %399 = vmatpush.msra.mxu0 %v330
    %400 = vmatpush.msra.mxu0 %v329
    %401 = vmatpush.msra.mxu0 %v328
    %402 = vmatpush.msra.mxu0 %v327
    %403 = vmatmul.f32.gmra.mxu0 %v293
    %v404 = vpop.f32.mrf.mxu0
    %v405 = vadd.f32 %v385, %v404
    %406 = vdwg.mxu0
    %407 = vst [vmem:[#allocation7] sm:$0x3] %v405
    // Predicated region
    $region30: #{tpu_custom_call.1} parent=1 // pred_check
      _
    $region31: #{tpu_custom_call.1} parent=1 // pred_check_branch
      %409 = sbr.rel (0) target = $region33
    $region32: #{tpu_custom_call.1} parent=1 // pred_region
      %411 = vsyncadd [#allocation4], 0
      %s413 = sshll.u32 [#allocation7], 4
      %s414 = int_to_ptr.vmem [resolvable:$true] %s413
      %s415 = sshll.u32 %s5, 4
      %s416 = int_to_ptr.hbm [resolvable:$true] %s415
      %418 = dma.vmem_to_hbm [thread:$0]  %s414, 32, %s416, [#allocation4]
    $region33: #{tpu_custom_call.1} parent=1 // pred_fallthru
      _
    // Predicated region
    $region34: #{tpu_custom_call.1} parent=1 // pred_check
      _
    $region35: #{tpu_custom_call.1} parent=1 // pred_check_branch
      %420 = sbr.rel (0) target = $region37
    $region36: #{tpu_custom_call.1} parent=1 // pred_region
      %422 = dma.done [#allocation4], 32
    $region37: #{tpu_custom_call.1} parent=1 // pred_fallthru
      _
    %423 = vsyncpa [#allocation3], 1
    %424 = vsyncpa [#allocation6], 1
    %425 = vsyncpa [#allocation4], 1

</llo_original>
